<compile_context>
chip_gen: v5e
topology: v5e:2x2
jax: 0.10.0
libtpu: 0.0.40
codegen_flags: <defaults>
</compile_context>

<pallas_src>
import jax
import jax.numpy as jnp
from jax.experimental import pallas as pl
from jax.experimental.pallas import tpu as pltpu


def _round_up(a: int, b: int) -> int:
    return ((a + b - 1) // b) * b


def mlp_kernel(x_ref, w1_ref, w2_ref, b_ref, o_ref):
    """One (tm, F) row tile of tokens: Linear -> ReLU -> (Dropout eval) -> Linear + residual."""
    x = x_ref[...]                                              # (tm, F), original dtype
    # Linear 1: MXU in compute dtype, f32 accumulate; bias add in f32 (VPU).
    h = jnp.dot(x.astype(w1_ref.dtype), w1_ref[...],
                preferred_element_type=jnp.float32)
    h = h + b_ref[0:1, :]
    # ReLU (VPU, f32).
    h = jnp.maximum(h, 0.0)
    # Dropout (eval mode) = identity.
    # Linear 2: MXU in compute dtype, f32 accumulate; bias add in f32.
    y = jnp.dot(h.astype(w2_ref.dtype), w2_ref[...],
                preferred_element_type=jnp.float32)
    y = y + b_ref[1:2, :]
    # Residual in f32 against the original-precision x.
    o_ref[...] = (y + x.astype(jnp.float32)).astype(o_ref.dtype)


def mlp_forward(x, w1, b1, w2, b2, *, tm=512, compute_dtype=jnp.bfloat16,
                vmem_limit_bytes=None):
    """x: (..., D).  w1: (H, D), b1: (H,), w2: (H, H), b2: (H,)  (PyTorch layout)."""
    orig_shape = x.shape
    D = orig_shape[-1]
    H = w1.shape[0]
    assert w1.shape == (H, D) and w2.shape == (H, H)
    assert b1.shape == (H,) and b2.shape == (H,)
    assert H == D, "residual requires hidden_dim == input_dim"

    cdt = jnp.dtype(compute_dtype)
    x2d = x.reshape(-1, D)
    M = x2d.shape[0]

    # ---- feature layout ----------------------------------------------------
    # pack > 1: small D dividing 128 -> token packing to a 128-lane slab.
    pack = (128 // D) if (D < 128 and 128 % D == 0) else 1
    F = _round_up(pack * D, 128)          # lane width the kernel sees
    f32 = jnp.float32

    # ---- weights / biases in kernel layout -----------------------------------
    if pack > 1:
        eye = jnp.eye(pack, dtype=cdt)
        w1t = jnp.kron(eye, w1.T.astype(cdt))        # (F, F) block-diagonal, exact
        w2t = jnp.kron(eye, w2.T.astype(cdt))
        b1v = jnp.tile(b1.astype(f32), pack)
        b2v = jnp.tile(b2.astype(f32), pack)
    elif F == D:
        # Lane-exact: no padding, no extra HBM copies in the wrapper.
        w1t = w1.T.astype(cdt)
        w2t = w2.T.astype(cdt)
        b1v = b1.astype(f32)
        b2v = b2.astype(f32)
    else:
        # Fallback: zero-pad to a 128 multiple (padded math stays exact).
        w1t = jnp.zeros((F, F), cdt).at[:D, :H].set(w1.T.astype(cdt))
        w2t = jnp.zeros((F, F), cdt).at[:H, :H].set(w2.T.astype(cdt))
        b1v = jnp.zeros((F,), f32).at[:H].set(b1.astype(f32))
        b2v = jnp.zeros((F,), f32).at[:H].set(b2.astype(f32))
    biases = jnp.stack([b1v, b2v])                   # (2, F) f32

    # ---- generation-aware VMEM budget ----------------------------------------
    if vmem_limit_bytes is None:
        try:
            phys = getattr(pltpu.get_tpu_info(), "vmem_capacity_bytes",
                           64 * 1024 * 1024)
        except Exception:  # pragma: no cover - conservative fallback (v7x-sized)
            phys = 64 * 1024 * 1024
        # ~96 MiB scoped on 128 MiB parts (v5e/v6e), ~48 MiB on 64 MiB (v7x).
        vmem_limit_bytes = int(min((phys * 3) // 4, 96 * 1024 * 1024))
    vmem_budget = vmem_limit_bytes - 8 * 1024 * 1024   # headroom for compiler scratch

    x_bytes = x2d.dtype.itemsize
    w_bytes = cdt.itemsize
    out_bytes = x2d.dtype.itemsize

    def vmem_est(t):
        weights = 2 * 2 * F * F * w_bytes        # two matrices, worst-case 2 buffers each
        bias = 2 * 2 * F * 4
        io = 2 * t * F * (x_bytes + out_bytes)   # double-buffered in/out row tiles
        live = t * F * (4 + 4 + 2 * w_bytes)     # f32 h, f32 y, compute-dtype x/h casts
        return weights + bias + io + live + 2 * 1024 * 1024

    # ---- row tile choice ------------------------------------------------------
    Mr = pl.cdiv(M, pack)                        # packed rows holding real tokens
    tm = min(_round_up(tm, 8), _round_up(Mr, 8))
    # v7x megacore: keep at least 2 grid steps when the problem allows it.
    tm = min(tm, max(8, _round_up(pl.cdiv(Mr, 2), 8)))
    while tm > 8 and vmem_est(tm) > vmem_budget:
        tm = max(8, tm - 64)

    rows = _round_up(Mr, tm)
    col_pad = F - pack * D                       # nonzero only on the padded fallback path
    row_pad_tokens = rows * pack - M
    x_in = x2d
    if row_pad_tokens or col_pad:
        x_in = jnp.pad(x2d, ((0, row_pad_tokens), (0, col_pad)))
    x_in = x_in.reshape(rows, F)                 # token packing is a pure reshape

    out = pl.pallas_call(
        mlp_kernel,
        out_shape=jax.ShapeDtypeStruct((rows, F), x2d.dtype),
        grid=(rows // tm,),
        in_specs=[
            pl.BlockSpec((tm, F), lambda i: (i, 0)),   # x row tile (streamed)
            pl.BlockSpec((F, F), lambda i: (0, 0)),    # W1^T (resident, constant index)
            pl.BlockSpec((F, F), lambda i: (0, 0)),    # W2^T (resident, constant index)
            pl.BlockSpec((2, F), lambda i: (0, 0)),    # [b1; b2] f32 (resident)
        ],
        out_specs=pl.BlockSpec((tm, F), lambda i: (i, 0)),
        compiler_params=pltpu.CompilerParams(
            dimension_semantics=("parallel",),
            vmem_limit_bytes=vmem_limit_bytes,
        ),
    )(x_in, w1t, w2t, biases)

    out = out.reshape(rows * pack, F // pack)[:M, :D]
    return out.reshape(orig_shape)


if __name__ == "__main__":
    def ref_mlp(xx, w1, b1, w2, b2):
        # Pure-JAX reference (eval-mode dropout = identity), full-precision matmuls.
        h = jnp.maximum(
            jnp.matmul(xx, w1.T, precision=jax.lax.Precision.HIGHEST) + b1, 0.0)
        return jnp.matmul(h, w2.T, precision=jax.lax.Precision.HIGHEST) + b2 + xx

    def make_params(key, dim):
        k1, kb1, k2, kb2 = jax.random.split(key, 4)
        bound = 1.0 / (dim ** 0.5)
        w1 = jax.random.uniform(k1, (dim, dim), minval=-bound, maxval=bound, dtype=jnp.float32)
        b1 = jax.random.uniform(kb1, (dim,), minval=-bound, maxval=bound, dtype=jnp.float32)
        w2 = jax.random.uniform(k2, (dim, dim), minval=-bound, maxval=bound, dtype=jnp.float32)
        b2 = jax.random.uniform(kb2, (dim,), minval=-bound, maxval=bound, dtype=jnp.float32)
        return w1, b1, w2, b2

    key = jax.random.PRNGKey(0)

    # Primary shape matching the module defaults: batch=2, seq=8, dim=hidden=32.
    # The extra dims exercise all three feature layouts:
    #   32  -> token packing (4 tokens per 128-lane row, block-diagonal weights)
    #   128 -> lane-exact, no padding / no wrapper copies
    #   96  -> zero-padded fallback to 128 lanes
    for dim in (32, 128, 96):
        kx, kp, key = jax.random.split(key, 3)
        x = jax.random.normal(kx, (2, 8, dim), dtype=jnp.float32)
        w1, b1, w2, b2 = make_params(kp, dim)
        y_ref = ref_mlp(x, w1, b1, w2, b2)

        # f32-to-MXU path: tight tolerance.
        out_f32 = jax.block_until_ready(
            mlp_forward(x, w1, b1, w2, b2, compute_dtype=jnp.float32))
        assert out_f32.shape == x.shape
        err = float(jnp.max(jnp.abs(out_f32 - y_ref)))
        assert jnp.allclose(out_f32, y_ref, atol=1e-4, rtol=1e-4), (dim, err)

        # Default bf16-to-MXU path (f32 accumulate, f32 bias/ReLU/residual): loose tolerance.
        out_bf16 = jax.block_until_ready(mlp_forward(x, w1, b1, w2, b2))
        assert out_bf16.shape == x.shape
        err_bf = float(jnp.max(jnp.abs(out_bf16 - y_ref)))
        assert jnp.allclose(out_bf16, y_ref, atol=0.1, rtol=0.05), (dim, err_bf)

    print("KERNEL_OK")
</pallas_src>

<mosaic_0001>
module attributes {stable_mosaic.version = 11 : i64} {
  func.func @mlp_kernel(%arg0: i32, %arg1: memref<8x128xf32, #tpu.memory_space<vmem>>, %arg2: memref<128x128xf32, #tpu.memory_space<vmem>>, %arg3: memref<128x128xf32, #tpu.memory_space<vmem>>, %arg4: memref<2x128xf32, #tpu.memory_space<vmem>>, %arg5: memref<8x128xf32, #tpu.memory_space<vmem>>) attributes {dimension_semantics = [#tpu.dimension_semantics<parallel>], iteration_bounds = array<i64: 1>, scalar_prefetch = 0 : i64, scratch_operands = 0 : i64, tpu.core_type = #tpu.core_type<tc>, window_params = [{transform_indices = @transform_0, window_bounds = array<i64: 8, 128>}, {pipeline_mode = #tpu.pipeline_mode<synchronous>, transform_indices = @transform_1, window_bounds = array<i64: 128, 128>}, {pipeline_mode = #tpu.pipeline_mode<synchronous>, transform_indices = @transform_2, window_bounds = array<i64: 128, 128>}, {pipeline_mode = #tpu.pipeline_mode<synchronous>, transform_indices = @transform_3, window_bounds = array<i64: 2, 128>}, {transform_indices = @transform_4, window_bounds = array<i64: 8, 128>}]} {
    %c0 = arith.constant 0 : index
    %c0_0 = arith.constant 0 : index
    %0 = vector.load %arg1[%c0, %c0_0] : memref<8x128xf32, #tpu.memory_space<vmem>>, vector<8x128xf32>
    %c0_1 = arith.constant 0 : index
    %c0_2 = arith.constant 0 : index
    %1 = vector.load %arg2[%c0_1, %c0_2] : memref<128x128xf32, #tpu.memory_space<vmem>>, vector<128x128xf32>
    %cst = arith.constant dense<0.000000e+00> : vector<8x128xf32>
    %2 = tpu.matmul %0, %1, %cst {dimension_numbers = #tpu.dot_dimension_numbers<[1], [0], [0], [1], [0, 0, 1, 1], [], []>} : vector<8x128xf32>, vector<128x128xf32>, vector<8x128xf32> -> vector<8x128xf32>
    %c0_3 = arith.constant 0 : index
    %c0_4 = arith.constant 0 : index
    %3 = vector.load %arg4[%c0_3, %c0_4] : memref<2x128xf32, #tpu.memory_space<vmem>>, vector<1x128xf32>
    %4 = vector.broadcast %3 : vector<1x128xf32> to vector<8x128xf32>
    %5 = arith.addf %2, %4 : vector<8x128xf32>
    %cst_5 = arith.constant 0.000000e+00 : f32
    %6 = vector.broadcast %cst_5 : f32 to vector<8x128xf32>
    %7 = arith.maximumf %5, %6 : vector<8x128xf32>
    %c0_6 = arith.constant 0 : index
    %c0_7 = arith.constant 0 : index
    %8 = vector.load %arg3[%c0_6, %c0_7] : memref<128x128xf32, #tpu.memory_space<vmem>>, vector<128x128xf32>
    %cst_8 = arith.constant dense<0.000000e+00> : vector<8x128xf32>
    %9 = tpu.matmul %7, %8, %cst_8 {dimension_numbers = #tpu.dot_dimension_numbers<[1], [0], [0], [1], [0, 0, 1, 1], [], []>} : vector<8x128xf32>, vector<128x128xf32>, vector<8x128xf32> -> vector<8x128xf32>
    %c1 = arith.constant 1 : index
    %c0_9 = arith.constant 0 : index
    %10 = vector.load %arg4[%c1, %c0_9] : memref<2x128xf32, #tpu.memory_space<vmem>>, vector<1x128xf32>
    %11 = vector.broadcast %10 : vector<1x128xf32> to vector<8x128xf32>
    %12 = arith.addf %9, %11 : vector<8x128xf32>
    %13 = arith.addf %12, %0 : vector<8x128xf32>
    %c0_10 = arith.constant 0 : index
    %c0_11 = arith.constant 0 : index
    %14 = vector.load %arg5[%c0_10, %c0_11] : memref<8x128xf32, #tpu.memory_space<vmem>>, vector<8x128xf32>
    tpu.vector_store %arg5[%c0_10, %c0_11], %13 {strides = array<i32>} : memref<8x128xf32, #tpu.memory_space<vmem>>, vector<8x128xf32>,
    return
  }
  func.func @transform_0(%arg0: i32) -> (i32, i32) {
    %c0_i32 = arith.constant 0 : i32
    %c0_i32_0 = arith.constant 0 : i32
    return %arg0, %c0_i32 : i32, i32
  }
  func.func @transform_1(%arg0: i32) -> (i32, i32) {
    %c0_i32 = arith.constant 0 : i32
    %c0_i32_0 = arith.constant 0 : i32
    %c0_i32_1 = arith.constant 0 : i32
    return %c0_i32, %c0_i32_0 : i32, i32
  }
  func.func @transform_2(%arg0: i32) -> (i32, i32) {
    %c0_i32 = arith.constant 0 : i32
    %c0_i32_0 = arith.constant 0 : i32
    %c0_i32_1 = arith.constant 0 : i32
    return %c0_i32, %c0_i32_0 : i32, i32
  }
  func.func @transform_3(%arg0: i32) -> (i32, i32) {
    %c0_i32 = arith.constant 0 : i32
    %c0_i32_0 = arith.constant 0 : i32
    %c0_i32_1 = arith.constant 0 : i32
    return %c0_i32, %c0_i32_0 : i32, i32
  }
  func.func @transform_4(%arg0: i32) -> (i32, i32) {
    %c0_i32 = arith.constant 0 : i32
    %c0_i32_0 = arith.constant 0 : i32
    return %arg0, %c0_i32 : i32, i32
  }
}

</mosaic_0001>

<llo_original>
// kernel: tpu_custom_call.1
$region0: #{tpu_custom_call.1}
  #allocation0 [shape = 'u32[]', space=smem, size = 0x4, offset = 0x4, fixed_abs, tag = 'smem constant byte address 0x4 - core index']
  #allocation1 [shape = 'u32[72,128]{1,0:T(1,128)}', space=vmem, size = 0x9000, scoped, tag = 'internal scratch']
  %s0 = inlined_call_operand.hbm [shape: f32[8,128], index: 0, kind: input, shape index: {}]
  %s1 = inlined_call_operand.hbm [shape: f32[128,128], index: 1, kind: input, shape index: {}]
  %s2 = inlined_call_operand.hbm [shape: f32[128,128], index: 2, kind: input, shape index: {}]
  %s3 = inlined_call_operand.vmem [shape: f32[2,128], index: 3, kind: input, shape index: {}]
  %s4 = inlined_call_operand.hbm [shape: f32[8,128], index: 4, kind: output, shape index: {}]
  %s5 = sld [smem:[#allocation0]]
  $region38: #{tpu_custom_call.1} parent=0
    _
  %s7 = ssub.s32 1, %s5
  %s8 = scalar_select 0, %s7, %s5
  $region1: #{tpu_custom_call.1} parent=0
    #allocation2 [shape = 'u8[4096]{0}', space=vmem, size = 0x1000, scoped, tag = 'input window, operand 0, single buffered']
    #allocation3 [shape = 's32[1]{0}', space=sflag, size = 0x4, scoped, tag = 'scoped memory for tpu_custom_call.1']
    #allocation4 [shape = 's32[1]{0}', space=sflag, size = 0x4, scoped, tag = 'scoped memory for tpu_custom_call.1']
    #allocation5 [shape = 'u8[65536]{0}', space=vmem, size = 0x10000, scoped, tag = 'input window, operand 1, single buffered']
    #allocation6 [shape = 's32[1]{0}', space=sflag, size = 0x4, scoped, tag = 'scoped memory for tpu_custom_call.1']
    #allocation7 [shape = 'u8[65536]{0}', space=vmem, size = 0x10000, scoped, tag = 'input window, operand 2, single buffered']
    #allocation8 [shape = 'u8[4096]{0}', space=vmem, size = 0x1000, scoped, tag = 'output window, operand 0, single buffered']
    %9 = vsyncpa [#allocation3], 0
    %10 = vsyncpa [#allocation6], 0
    %11 = vsyncpa [#allocation4], 0
    // Predicated region
    $region2: #{tpu_custom_call.1} parent=1 // pred_check
      _
    $region3: #{tpu_custom_call.1} parent=1 // pred_check_branch
      %13 = sbr.rel (0) target = $region5
    $region4: #{tpu_custom_call.1} parent=1 // pred_region
      %15 = vsyncadd [#allocation3], 0
      %s17 = sshll.u32 %s0, 4
      %s18 = int_to_ptr.hbm [resolvable:$true] %s17
      %s19 = sshll.u32 [#allocation2], 4
      %s20 = int_to_ptr.vmem [resolvable:$true] %s19
      %22 = dma.hbm_to_vmem [thread:$0]  %s18, 128, %s20, [#allocation3]
    $region5: #{tpu_custom_call.1} parent=1 // pred_fallthru
      _
    // Predicated region
    $region6: #{tpu_custom_call.1} parent=1 // pred_check
      _
    $region7: #{tpu_custom_call.1} parent=1 // pred_check_branch
      %24 = sbr.rel (0) target = $region9
    $region8: #{tpu_custom_call.1} parent=1 // pred_region
      %26 = vsyncadd [#allocation6], 0
      %s27 = sshll.u32 %s1, 4
      %s28 = int_to_ptr.hbm [resolvable:$true] %s27
      %s29 = sshll.u32 [#allocation5], 4
      %s30 = int_to_ptr.vmem [resolvable:$true] %s29
      %35 = dma.hbm_to_vmem [thread:$0]  %s28, 2048, %s30, [#allocation6], 128, 128, 8
    $region9: #{tpu_custom_call.1} parent=1 // pred_fallthru
      _
    // Predicated region
    $region10: #{tpu_custom_call.1} parent=1 // pred_check
      _
    $region11: #{tpu_custom_call.1} parent=1 // pred_check_branch
      %37 = sbr.rel (0) target = $region13
    $region12: #{tpu_custom_call.1} parent=1 // pred_region
      %39 = vsyncadd [#allocation6], 0
      %s40 = sshll.u32 %s2, 4
      %s41 = int_to_ptr.hbm [resolvable:$true] %s40
      %s42 = sshll.u32 [#allocation7], 4
      %s43 = int_to_ptr.vmem [resolvable:$true] %s42
      %48 = dma.hbm_to_vmem [thread:$0]  %s41, 2048, %s43, [#allocation6], 128, 128, 8
    $region13: #{tpu_custom_call.1} parent=1 // pred_fallthru
      _
    // Predicated region
    $region14: #{tpu_custom_call.1} parent=1 // pred_check
      _
    $region15: #{tpu_custom_call.1} parent=1 // pred_check_branch
      %50 = sbr.rel (0) target = $region17
    $region16: #{tpu_custom_call.1} parent=1 // pred_region
      _
    $region17: #{tpu_custom_call.1} parent=1 // pred_fallthru
      _
    // Predicated region
    $region18: #{tpu_custom_call.1} parent=1 // pred_check
      _
    $region19: #{tpu_custom_call.1} parent=1 // pred_check_branch
      %52 = sbr.rel (0) target = $region21
    $region20: #{tpu_custom_call.1} parent=1 // pred_region
      %54 = dma.done [#allocation3], 128
    $region21: #{tpu_custom_call.1} parent=1 // pred_fallthru
      _
    // Predicated region
    $region22: #{tpu_custom_call.1} parent=1 // pred_check
      _
    $region23: #{tpu_custom_call.1} parent=1 // pred_check_branch
      %56 = sbr.rel (0) target = $region25
    $region24: #{tpu_custom_call.1} parent=1 // pred_region
      %58 = dma.done [#allocation6], 2048
    $region25: #{tpu_custom_call.1} parent=1 // pred_fallthru
      _
    // Predicated region
    $region26: #{tpu_custom_call.1} parent=1 // pred_check
      _
    $region27: #{tpu_custom_call.1} parent=1 // pred_check_branch
      %60 = sbr.rel (0) target = $region29
    $region28: #{tpu_custom_call.1} parent=1 // pred_region
      %62 = dma.done [#allocation6], 2048
    $region29: #{tpu_custom_call.1} parent=1 // pred_fallthru
      _
    %v63 = vld [vmem:[#allocation2] sm:$0xff]
    %v64 = vld [vmem:[#allocation5] sm:$0xff]
    %v65 = vld [vmem:[#allocation5 + $0x8] sm:$0xff]
    %v66 = vld [vmem:[#allocation5 + $0x10] sm:$0xff]
    %v67 = vld [vmem:[#allocation5 + $0x18] sm:$0xff]
    %v68 = vld [vmem:[#allocation5 + $0x20] sm:$0xff]
    %v69 = vld [vmem:[#allocation5 + $0x28] sm:$0xff]
    %v70 = vld [vmem:[#allocation5 + $0x30] sm:$0xff]
    %v71 = vld [vmem:[#allocation5 + $0x38] sm:$0xff]
    %v72 = vld [vmem:[#allocation5 + $0x40] sm:$0xff]
    %v73 = vld [vmem:[#allocation5 + $0x48] sm:$0xff]
    %v74 = vld [vmem:[#allocation5 + $0x50] sm:$0xff]
    %v75 = vld [vmem:[#allocation5 + $0x58] sm:$0xff]
    %v76 = vld [vmem:[#allocation5 + $0x60] sm:$0xff]
    %v77 = vld [vmem:[#allocation5 + $0x68] sm:$0xff]
    %v78 = vld [vmem:[#allocation5 + $0x70] sm:$0xff]
    %v79 = vld [vmem:[#allocation5 + $0x78] sm:$0xff]
    %v80 = vld [vmem:[%s3] sm:$0x1]
    %v81 = vperm.slane %v80, 0
    %82 = vmatpush.msra.mxu0 %v79
    %83 = vmatpush.msra.mxu0 %v78
    %84 = vmatpush.msra.mxu0 %v77
    %85 = vmatpush.msra.mxu0 %v76
    %86 = vmatpush.msra.mxu0 %v75
    %87 = vmatpush.msra.mxu0 %v74
    %88 = vmatpush.msra.mxu0 %v73
    %89 = vmatpush.msra.mxu0 %v72
    %90 = vmatpush.msra.mxu0 %v71
    %91 = vmatpush.msra.mxu0 %v70
    %92 = vmatpush.msra.mxu0 %v69
    %93 = vmatpush.msra.mxu0 %v68
    %94 = vmatpush.msra.mxu0 %v67
    %95 = vmatpush.msra.mxu0 %v66
    %96 = vmatpush.msra.mxu0 %v65
    %97 = vmatpush.msra.mxu0 %v64
    %98 = vmatmul.f32.gmra.mxu0 %v63
    %v99 = vpop.f32.mrf.mxu0
    %v100 = vadd.f32 %v81, %v99
    %101 = vdwg.mxu0
    %v102 = vmax.f32 %v100, 0.0
    %v103 = vld [vmem:[#allocation7] sm:$0xff]
    %v104 = vld [vmem:[#allocation7 + $0x8] sm:$0xff]
    %v105 = vld [vmem:[#allocation7 + $0x10] sm:$0xff]
    %v106 = vld [vmem:[#allocation7 + $0x18] sm:$0xff]
    %v107 = vld [vmem:[#allocation7 + $0x20] sm:$0xff]
    %v108 = vld [vmem:[#allocation7 + $0x28] sm:$0xff]
    %v109 = vld [vmem:[#allocation7 + $0x30] sm:$0xff]
    %v110 = vld [vmem:[#allocation7 + $0x38] sm:$0xff]
    %v111 = vld [vmem:[#allocation7 + $0x40] sm:$0xff]
    %v112 = vld [vmem:[#allocation7 + $0x48] sm:$0xff]
    %v113 = vld [vmem:[#allocation7 + $0x50] sm:$0xff]
    %v114 = vld [vmem:[#allocation7 + $0x58] sm:$0xff]
    %v115 = vld [vmem:[#allocation7 + $0x60] sm:$0xff]
    %v116 = vld [vmem:[#allocation7 + $0x68] sm:$0xff]
    %v117 = vld [vmem:[#allocation7 + $0x70] sm:$0xff]
    %v118 = vld [vmem:[#allocation7 + $0x78] sm:$0xff]
    %v119 = vld [vmem:[%s3 + $0x1] sm:$0x1]
    %v120 = vperm.slane %v119, 0
    %121 = vmatpush.msra.mxu0 %v118
    %122 = vmatpush.msra.mxu0 %v117
    %123 = vmatpush.msra.mxu0 %v116
    %124 = vmatpush.msra.mxu0 %v115
    %125 = vmatpush.msra.mxu0 %v114
    %126 = vmatpush.msra.mxu0 %v113
    %127 = vmatpush.msra.mxu0 %v112
    %128 = vmatpush.msra.mxu0 %v111
    %129 = vmatpush.msra.mxu0 %v110
    %130 = vmatpush.msra.mxu0 %v109
    %131 = vmatpush.msra.mxu0 %v108
    %132 = vmatpush.msra.mxu0 %v107
    %133 = vmatpush.msra.mxu0 %v106
    %134 = vmatpush.msra.mxu0 %v105
    %135 = vmatpush.msra.mxu0 %v104
    %136 = vmatpush.msra.mxu0 %v103
    %137 = vmatmul.f32.gmra.mxu0 %v102
    %v138 = vpop.f32.mrf.mxu0
    %v139 = vadd.f32 %v120, %v138
    %140 = vdwg.mxu0
    %v141 = vadd.f32 %v139, %v63
    %142 = vst [vmem:[#allocation8] sm:$0xff] %v141
    // Predicated region
    $region30: #{tpu_custom_call.1} parent=1 // pred_check
      _
    $region31: #{tpu_custom_call.1} parent=1 // pred_check_branch
      %144 = sbr.rel (0) target = $region33
    $region32: #{tpu_custom_call.1} parent=1 // pred_region
      %146 = vsyncadd [#allocation4], 0
      %s148 = sshll.u32 [#allocation8], 4
      %s149 = int_to_ptr.vmem [resolvable:$true] %s148
      %s150 = sshll.u32 %s4, 4
      %s151 = int_to_ptr.hbm [resolvable:$true] %s150
      %153 = dma.vmem_to_hbm [thread:$0]  %s149, 128, %s151, [#allocation4]
    $region33: #{tpu_custom_call.1} parent=1 // pred_fallthru
      _
    // Predicated region
    $region34: #{tpu_custom_call.1} parent=1 // pred_check
      _
    $region35: #{tpu_custom_call.1} parent=1 // pred_check_branch
      %155 = sbr.rel (0) target = $region37
    $region36: #{tpu_custom_call.1} parent=1 // pred_region
      %157 = dma.done [#allocation4], 128
    $region37: #{tpu_custom_call.1} parent=1 // pred_fallthru
      _
    %158 = vsyncpa [#allocation3], 1
    %159 = vsyncpa [#allocation6], 1
    %160 = vsyncpa [#allocation4], 1

</llo_original>
